<compile_context>
chip_gen: v6e
topology: v6e:2x2x1
jax: 0.10.0
libtpu: 0.0.40
codegen_flags: <defaults>
</compile_context>

<pallas_src>
import jax
import jax.numpy as jnp
import numpy as np
from jax import lax
from jax.experimental import pallas as pl
from jax.experimental.pallas import tpu as pltpu

# ---- CifPredictor hyperparameters (from __init__) -------------------------
IDIM = 32                      # hidden size D
L_ORDER = 1
R_ORDER = 1
KSIZE = L_ORDER + R_ORDER + 1  # depthwise conv kernel size
THRESHOLD = 1.0
SMOOTH_FACTOR = 1.0
NOISE_THRESHOLD = 0.0
TAIL_THRESHOLD = 0.45


# ---------------------------------------------------------------------------
# Fused kernel: conv + residual + relu + Linear + sigmoid + mask + tail + CIF.
# One grid step per batch element.
# ---------------------------------------------------------------------------
def _cif_fused_kernel(h_ref, mask_ref, tail_ref, wc_ref, bc_ref, wl_ref, bl_ref,
                      embeds_ref, alphas_ref, fires_ref, hp_ref):
    # h_ref:      (T, D)    hidden for this batch element
    # mask_ref:   (T, 1)    float mask column
    # tail_ref:   (Tp, 1)   tail_threshold * (mask_2 - mask_1), Tp = T + 1
    # wc_ref:     (K, D)    depthwise conv weight (torch weight[d, 0, k] -> wc[k, d])
    # bc_ref:     (1, D)    conv bias
    # wl_ref:     (1, D)    cif_output Linear weight
    # bl_ref:     (1, 1)    cif_output Linear bias
    # embeds_ref: (Tp, D)   row n = n-th fired frame, zeros elsewhere
    # alphas_ref: (1, Tp)   alphas after tail_process_fn (lane-dense)
    # fires_ref:  (1, Tp)   cif_peak (lane-dense)
    # hp_ref:     (T+2, D)  VMEM scratch: zero-padded hidden for the conv
    T, D = h_ref.shape
    Tp = alphas_ref.shape[-1]            # == T + 1

    h = h_ref[...].astype(jnp.float32)

    # ---- depthwise Conv1d(K=3, groups=D) with (l_order, r_order) zero pad ----
    # Padding happens in VMEM scratch; no HBM pad pass in the wrapper.
    zrow = jnp.zeros((1, D), jnp.float32)
    hp_ref[0:1, :] = zrow
    hp_ref[1:T + 1, :] = h
    hp_ref[T + 1:T + 2, :] = zrow
    hp = hp_ref[...]
    mem = (bc_ref[...].astype(jnp.float32)
           + wc_ref[0:1, :] * hp[0:T, :]
           + wc_ref[1:2, :] * hp[1:T + 1, :]
           + wc_ref[2:3, :] * hp[2:T + 2, :])
    # residual + dropout(identity at inference) + relu
    out = jnp.maximum(mem + h, 0.0)

    # ---- Linear(D, 1) + sigmoid + relu-threshold + mask ----------------------
    o_col = jnp.sum(out * wl_ref[...].astype(jnp.float32),
                    axis=-1, keepdims=True) + bl_ref[...]          # (T, 1)
    a_col = jax.nn.sigmoid(o_col)
    a_col = jnp.maximum(a_col * SMOOTH_FACTOR - NOISE_THRESHOLD, 0.0)
    a_col = a_col * mask_ref[...].astype(jnp.float32)

    # tail_process_fn (mask branch): alphas_ext = [alphas, 0] + tail
    tail_col = tail_ref[...].astype(jnp.float32)                   # (Tp, 1)
    a_ext_col = a_col + tail_col[0:T, :]                           # alphas_ext[:T]
    a_tail = tail_col[T:T + 1, :]                                  # (1,1) alphas_ext[T]

    # ---- CIF integrate-and-fire, closed form ---------------------------------
    # All alphas are < 1 (sigmoid * 1.0, tail 0.45), so at most one fire per
    # step and #fires(<=t) == floor(cumsum(alpha)[<=t]).  Prefix sums are done
    # with exact f32 masked reductions (column in -> lane-dense row out), so
    # fire placement is independent of MXU precision.
    r = lax.broadcasted_iota(jnp.int32, (T, T), 0)     # reduction index t'
    c = lax.broadcasted_iota(jnp.int32, (T, T), 1)     # output index t
    csum_ex = jnp.sum(jnp.where(r < c, a_ext_col, 0.0),
                      axis=0, keepdims=True)                        # (1, T) exclusive
    a_row = jnp.sum(jnp.where(r == c, a_ext_col, 0.0),
                    axis=0, keepdims=True)                          # (1, T) alphas row
    csum = csum_ex + a_row                                          # inclusive

    fb = jnp.floor(csum_ex)                      # fires strictly before step t
    fired = jnp.floor(csum) > fb
    # cif_peak = integrate AFTER "+= alpha", BEFORE the "-1" (torch ordering).
    fires_row = csum - fb                                           # (1, T)
    cur = jnp.where(fired, 1.0 - (csum_ex - fb), a_row)
    rem = a_row - cur

    # Tail step t == T: hidden row is zero, so it only affects fires/num_fires.
    csum_last = csum[:, T - 1:T]                                    # (1, 1)
    csum_total = csum_last + a_tail
    fires_tail = csum_total - jnp.floor(csum_last)
    num_fires = jnp.floor(csum_total).astype(jnp.int32)             # (1, 1)

    # ---- fired frames as one MXU matmul: embeds = W @ hidden -----------------
    # h[t] contributes cur[t] to output row fb[t] and rem[t] to row fb[t] + 1.
    # Rows >= num_fires (the trailing, partially integrated frame) are dropped,
    # matching the torch reference which only emits fired frames.
    fb_i = fb.astype(jnp.int32)                                     # (1, T)
    n_iota = lax.broadcasted_iota(jnp.int32, (Tp, T), 0)
    w_mat = (jnp.where(n_iota == fb_i, cur, 0.0)
             + jnp.where(n_iota == fb_i + 1, rem, 0.0))
    w_mat = jnp.where(n_iota < num_fires, w_mat, 0.0)
    embeds = lax.dot_general(w_mat, h, (((1,), (0,)), ((), ())),
                             preferred_element_type=jnp.float32)
    embeds_ref[...] = embeds.astype(embeds_ref.dtype)

    # ---- lane-dense (1, Tp) outputs ------------------------------------------
    alphas_ref[:, 0:T] = a_row
    alphas_ref[:, T:Tp] = a_tail
    fires_ref[:, 0:T] = fires_row
    fires_ref[:, T:Tp] = fires_tail


# ---------------------------------------------------------------------------
# Forward wrapper (inference path: target_label / target_label_length None,
# tail_threshold > 0, mask provided).
# ---------------------------------------------------------------------------
def cif_predictor_forward(hidden, mask, params):
    B, T, D = hidden.shape
    Tp = T + 1
    mask_f = mask.astype(jnp.float32)

    # tail_process_fn mask arithmetic -- tiny (B, Tp) arrays, hidden untouched.
    zeros_t = jnp.zeros((B, 1), jnp.float32)
    ones_t = jnp.ones((B, 1), jnp.float32)
    mask_1 = jnp.concatenate([mask_f, zeros_t], axis=1)
    mask_2 = jnp.concatenate([ones_t, mask_f], axis=1)
    tail = (mask_2 - mask_1) * TAIL_THRESHOLD                       # (B, Tp)

    embeds, alphas3, fires3 = pl.pallas_call(
        _cif_fused_kernel,
        out_shape=(jax.ShapeDtypeStruct((B, Tp, D), jnp.float32),
                   jax.ShapeDtypeStruct((B, 1, Tp), jnp.float32),
                   jax.ShapeDtypeStruct((B, 1, Tp), jnp.float32)),
        grid=(B,),
        in_specs=[
            pl.BlockSpec((None, T, D), lambda b: (b, 0, 0)),        # hidden
            pl.BlockSpec((None, T, 1), lambda b: (b, 0, 0)),        # mask
            pl.BlockSpec((None, Tp, 1), lambda b: (b, 0, 0)),       # tail
            pl.BlockSpec((KSIZE, D), lambda b: (0, 0)),             # conv_w
            pl.BlockSpec((1, D), lambda b: (0, 0)),                 # conv_b
            pl.BlockSpec((1, D), lambda b: (0, 0)),                 # lin_w
            pl.BlockSpec((1, 1), lambda b: (0, 0)),                 # lin_b
        ],
        out_specs=(
            pl.BlockSpec((None, Tp, D), lambda b: (b, 0, 0)),
            pl.BlockSpec((None, 1, Tp), lambda b: (b, 0, 0)),
            pl.BlockSpec((None, 1, Tp), lambda b: (b, 0, 0)),
        ),
        scratch_shapes=[pltpu.VMEM((T + 2, D), jnp.float32)],
        compiler_params=pltpu.CompilerParams(
            dimension_semantics=("parallel",)),
    )(hidden, mask_f[:, :, None], tail[:, :, None],
      params["conv_w"], params["conv_b"], params["lin_w"], params["lin_b"])

    alphas = alphas3[:, 0, :]                                       # (B, Tp)
    cif_peak = fires3[:, 0, :]                                      # (B, Tp)
    token_num = jnp.floor(jnp.sum(alphas, axis=-1))
    return embeds, token_num, alphas, cif_peak


# ---------------------------------------------------------------------------
# Plain-JAX/numpy reference (direct port of the torch module) for verification.
# ---------------------------------------------------------------------------
def reference_forward(hidden, mask, params):
    B, T, D = hidden.shape
    Tp = T + 1
    mask_f = mask.astype(jnp.float32)

    hp = jnp.pad(hidden, ((0, 0), (L_ORDER, R_ORDER), (0, 0)))
    mem = jnp.zeros((B, T, D), jnp.float32) + params["conv_b"][None, :, :]
    for k in range(KSIZE):
        mem = mem + hp[:, k:k + T, :] * params["conv_w"][k][None, None, :]
    out = jnp.maximum(mem + hidden, 0.0)
    o = jnp.sum(out * params["lin_w"][0][None, None, :], axis=-1) + params["lin_b"][0, 0]
    alphas = jax.nn.sigmoid(o)
    alphas = jnp.maximum(alphas * SMOOTH_FACTOR - NOISE_THRESHOLD, 0.0) * mask_f

    zeros_t = jnp.zeros((B, 1), jnp.float32)
    ones_t = jnp.ones((B, 1), jnp.float32)
    mask_1 = jnp.concatenate([mask_f, zeros_t], axis=1)
    mask_2 = jnp.concatenate([ones_t, mask_f], axis=1)
    alphas_ext = jnp.concatenate([alphas, zeros_t], axis=1) + (mask_2 - mask_1) * TAIL_THRESHOLD
    hidden_ext = jnp.concatenate([hidden, jnp.zeros((B, 1, D), hidden.dtype)], axis=1)
    token_num = jnp.floor(jnp.sum(alphas_ext, axis=-1))

    integrate = jnp.zeros((B,), jnp.float32)
    frame = jnp.zeros((B, D), jnp.float32)
    fires_l, frames_l = [], []
    for t in range(Tp):
        alpha = alphas_ext[:, t]
        dist = 1.0 - integrate
        integrate = integrate + alpha
        fires_l.append(integrate)
        fire = integrate >= THRESHOLD
        cur = jnp.where(fire, dist, alpha)
        rem = alpha - cur
        frame = frame + cur[:, None] * hidden_ext[:, t, :]
        frames_l.append(frame)
        integrate = jnp.where(fire, integrate - 1.0, integrate)
        frame = jnp.where(fire[:, None], rem[:, None] * hidden_ext[:, t, :], frame)
    fires = np.asarray(jnp.stack(fires_l, axis=1))
    frames = np.asarray(jnp.stack(frames_l, axis=1))

    embeds = np.zeros((B, Tp, D), np.float32)
    for b in range(B):
        sel = frames[b][fires[b] >= THRESHOLD]
        embeds[b, :sel.shape[0], :] = sel
    return embeds, np.asarray(token_num), np.asarray(alphas_ext), fires


if __name__ == "__main__":
    key = jax.random.PRNGKey(0)
    kh, kw, kb, klw, klb = jax.random.split(key, 5)

    B, T, D = 2, 8, IDIM
    hidden = jax.random.normal(kh, (B, T, D), jnp.float32)
    lengths = jnp.array([T, T - 2], jnp.int32)
    mask = (jnp.arange(T)[None, :] < lengths[:, None]).astype(jnp.float32)   # (B, T)

    # Deterministic synthetic parameters (shapes from CifPredictor.__init__):
    #   cif_conv1d: Conv1d(D, D, K, groups=D) -> weight (D,1,K) stored as (K,D), bias (D,)->(1,D)
    #   cif_output: Linear(D, 1)              -> weight (1,D), bias (1,)->(1,1)
    params = {
        "conv_w": 0.1 * jax.random.normal(kw, (KSIZE, D), jnp.float32),
        "conv_b": 0.05 * jax.random.normal(kb, (1, D), jnp.float32),
        "lin_w": 0.3 * jax.random.normal(klw, (1, D), jnp.float32),
        "lin_b": 0.1 * jax.random.normal(klb, (1, 1), jnp.float32),
    }

    fwd = jax.jit(cif_predictor_forward)
    acoustic_embeds, token_num, alphas, cif_peak = jax.block_until_ready(
        fwd(hidden, mask, params))

    # Reference check (pure JAX/numpy port of the torch module).
    ref_embeds, ref_token_num, ref_alphas, ref_peak = reference_forward(hidden, mask, params)

    # Emulates `acoustic_embeds[:, :token_num_int, :]` (data-dependent shape ->
    # done host-side after the device computation, like .item() in torch).
    # TODO(synk): data-dependent output length cannot be expressed on-device.
    token_num_int = int(jnp.max(token_num))
    acoustic_embeds = np.asarray(acoustic_embeds)[:, :token_num_int, :]
    ref_embeds = ref_embeds[:, :token_num_int, :]

    np.testing.assert_allclose(np.asarray(alphas), ref_alphas, atol=1e-4, rtol=1e-4)
    np.testing.assert_allclose(np.asarray(cif_peak), ref_peak, atol=1e-4, rtol=1e-4)
    np.testing.assert_allclose(np.asarray(token_num), ref_token_num, atol=0, rtol=0)
    np.testing.assert_allclose(acoustic_embeds, ref_embeds, atol=2e-2, rtol=2e-2)

    assert acoustic_embeds.shape == (B, token_num_int, D)
    assert token_num.shape == (B,)
    assert alphas.shape == (B, T + 1)
    assert cif_peak.shape == (B, T + 1)
    print("KERNEL_OK")
</pallas_src>

<mosaic_0001>
module attributes {stable_mosaic.version = 11 : i64} {
  func.func @_cif_fused_kernel(%arg0: i32, %arg1: memref<1x8x32xf32, #tpu.memory_space<vmem>>, %arg2: memref<1x8x1xf32, #tpu.memory_space<vmem>>, %arg3: memref<1x9x1xf32, #tpu.memory_space<vmem>>, %arg4: memref<3x32xf32, #tpu.memory_space<vmem>>, %arg5: memref<1x32xf32, #tpu.memory_space<vmem>>, %arg6: memref<1x32xf32, #tpu.memory_space<vmem>>, %arg7: memref<1x1xf32, #tpu.memory_space<vmem>>, %arg8: memref<1x9x32xf32, #tpu.memory_space<vmem>>, %arg9: memref<1x1x9xf32, #tpu.memory_space<vmem>>, %arg10: memref<1x1x9xf32, #tpu.memory_space<vmem>>, %arg11: memref<10x32xf32, #tpu.memory_space<vmem>>) attributes {dimension_semantics = [#tpu.dimension_semantics<parallel>], iteration_bounds = array<i64: 2>, scalar_prefetch = 0 : i64, scratch_operands = 1 : i64, tpu.core_type = #tpu.core_type<tc>, window_params = [{transform_indices = @transform_0, window_bounds = array<i64: 1, 8, 32>}, {transform_indices = @transform_1, window_bounds = array<i64: 1, 8, 1>}, {transform_indices = @transform_2, window_bounds = array<i64: 1, 9, 1>}, {pipeline_mode = #tpu.pipeline_mode<synchronous>, transform_indices = @transform_3, window_bounds = array<i64: 3, 32>}, {pipeline_mode = #tpu.pipeline_mode<synchronous>, transform_indices = @transform_4, window_bounds = array<i64: 1, 32>}, {pipeline_mode = #tpu.pipeline_mode<synchronous>, transform_indices = @transform_5, window_bounds = array<i64: 1, 32>}, {pipeline_mode = #tpu.pipeline_mode<synchronous>, transform_indices = @transform_6, window_bounds = array<i64: 1, 1>}, {transform_indices = @transform_7, window_bounds = array<i64: 1, 9, 32>}, {transform_indices = @transform_8, window_bounds = array<i64: 1, 1, 9>}, {transform_indices = @transform_9, window_bounds = array<i64: 1, 1, 9>}]} {
    %c0 = arith.constant 0 : index
    %c0_0 = arith.constant 0 : index
    %c0_1 = arith.constant 0 : index
    %0 = vector.load %arg1[%c0, %c0_0, %c0_1] : memref<1x8x32xf32, #tpu.memory_space<vmem>>, vector<1x8x32xf32>
    %1 = vector.shape_cast %0 : vector<1x8x32xf32> to vector<8x32xf32>
    %cst = arith.constant 0.000000e+00 : f32
    %2 = vector.broadcast %cst : f32 to vector<1x32xf32>
    %c0_2 = arith.constant 0 : index
    %c0_3 = arith.constant 0 : index
    %3 = vector.load %arg11[%c0_2, %c0_3] : memref<10x32xf32, #tpu.memory_space<vmem>>, vector<1x32xf32>
    tpu.vector_store %arg11[%c0_2, %c0_3], %2 {strides = array<i32>} : memref<10x32xf32, #tpu.memory_space<vmem>>, vector<1x32xf32>,
    %c1 = arith.constant 1 : index
    %c0_4 = arith.constant 0 : index
    %4 = vector.load %arg11[%c1, %c0_4] : memref<10x32xf32, #tpu.memory_space<vmem>>, vector<8x32xf32>
    tpu.vector_store %arg11[%c1, %c0_4], %1 {strides = array<i32>} : memref<10x32xf32, #tpu.memory_space<vmem>>, vector<8x32xf32>,
    %c9 = arith.constant 9 : index
    %c0_5 = arith.constant 0 : index
    %5 = vector.load %arg11[%c9, %c0_5] : memref<10x32xf32, #tpu.memory_space<vmem>>, vector<1x32xf32>
    tpu.vector_store %arg11[%c9, %c0_5], %2 {strides = array<i32>} : memref<10x32xf32, #tpu.memory_space<vmem>>, vector<1x32xf32>,
    %c0_6 = arith.constant 0 : index
    %c0_7 = arith.constant 0 : index
    %6 = vector.load %arg11[%c0_6, %c0_7] : memref<10x32xf32, #tpu.memory_space<vmem>>, vector<10x32xf32>
    %c0_8 = arith.constant 0 : index
    %c0_9 = arith.constant 0 : index
    %7 = vector.load %arg5[%c0_8, %c0_9] : memref<1x32xf32, #tpu.memory_space<vmem>>, vector<1x32xf32>
    %c0_10 = arith.constant 0 : index
    %c0_11 = arith.constant 0 : index
    %8 = vector.load %arg4[%c0_10, %c0_11] : memref<3x32xf32, #tpu.memory_space<vmem>>, vector<1x32xf32>
    %9 = vector.extract_strided_slice %6 {offsets = [0, 0], sizes = [8, 32], strides = [1, 1]} : vector<10x32xf32> to vector<8x32xf32>
    %10 = vector.broadcast %8 : vector<1x32xf32> to vector<8x32xf32>
    %11 = arith.mulf %10, %9 : vector<8x32xf32>
    %12 = vector.broadcast %7 : vector<1x32xf32> to vector<8x32xf32>
    %13 = arith.addf %12, %11 : vector<8x32xf32>
    %c1_12 = arith.constant 1 : index
    %c0_13 = arith.constant 0 : index
    %14 = vector.load %arg4[%c1_12, %c0_13] : memref<3x32xf32, #tpu.memory_space<vmem>>, vector<1x32xf32>
    %15 = vector.extract_strided_slice %6 {offsets = [1, 0], sizes = [8, 32], strides = [1, 1]} : vector<10x32xf32> to vector<8x32xf32>
    %16 = vector.broadcast %14 : vector<1x32xf32> to vector<8x32xf32>
    %17 = arith.mulf %16, %15 : vector<8x32xf32>
    %18 = arith.addf %13, %17 : vector<8x32xf32>
    %c2 = arith.constant 2 : index
    %c0_14 = arith.constant 0 : index
    %19 = vector.load %arg4[%c2, %c0_14] : memref<3x32xf32, #tpu.memory_space<vmem>>, vector<1x32xf32>
    %20 = vector.extract_strided_slice %6 {offsets = [2, 0], sizes = [8, 32], strides = [1, 1]} : vector<10x32xf32> to vector<8x32xf32>
    %21 = vector.broadcast %19 : vector<1x32xf32> to vector<8x32xf32>
    %22 = arith.mulf %21, %20 : vector<8x32xf32>
    %23 = arith.addf %18, %22 : vector<8x32xf32>
    %24 = arith.addf %23, %1 : vector<8x32xf32>
    %cst_15 = arith.constant 0.000000e+00 : f32
    %25 = vector.broadcast %cst_15 : f32 to vector<8x32xf32>
    %26 = arith.maximumf %24, %25 : vector<8x32xf32>
    %c0_16 = arith.constant 0 : index
    %c0_17 = arith.constant 0 : index
    %27 = vector.load %arg6[%c0_16, %c0_17] : memref<1x32xf32, #tpu.memory_space<vmem>>, vector<1x32xf32>
    %28 = vector.broadcast %27 : vector<1x32xf32> to vector<8x32xf32>
    %29 = arith.mulf %26, %28 : vector<8x32xf32>
    %cst_18 = arith.constant dense<0.000000e+00> : vector<8xf32>
    %30 = vector.multi_reduction <add>, %29, %cst_18 [1] : vector<8x32xf32> to vector<8xf32>
    %31 = vector.shape_cast %30 : vector<8xf32> to vector<8x1xf32>
    %c0_19 = arith.constant 0 : index
    %c0_20 = arith.constant 0 : index
    %32 = vector.load %arg7[%c0_19, %c0_20] : memref<1x1xf32, #tpu.memory_space<vmem>>, vector<1x1xf32>
    %33 = vector.broadcast %32 : vector<1x1xf32> to vector<8x1xf32>
    %34 = arith.addf %31, %33 : vector<8x1xf32>
    %35 = arith.negf %34 : vector<8x1xf32>
    %36 = math.exp %35 : vector<8x1xf32>
    %cst_21 = arith.constant 1.000000e+00 : f32
    %37 = vector.broadcast %cst_21 : f32 to vector<8x1xf32>
    %38 = arith.addf %37, %36 : vector<8x1xf32>
    %39 = arith.divf %37, %38 : vector<8x1xf32>
    %cst_22 = arith.constant 1.000000e+00 : f32
    %40 = vector.broadcast %cst_22 : f32 to vector<8x1xf32>
    %41 = arith.mulf %39, %40 : vector<8x1xf32>
    %cst_23 = arith.constant 0.000000e+00 : f32
    %42 = vector.broadcast %cst_23 : f32 to vector<8x1xf32>
    %43 = arith.subf %41, %42 : vector<8x1xf32>
    %cst_24 = arith.constant 0.000000e+00 : f32
    %44 = vector.broadcast %cst_24 : f32 to vector<8x1xf32>
    %45 = arith.maximumf %43, %44 : vector<8x1xf32>
    %c0_25 = arith.constant 0 : index
    %c0_26 = arith.constant 0 : index
    %c0_27 = arith.constant 0 : index
    %46 = vector.load %arg2[%c0_25, %c0_26, %c0_27] : memref<1x8x1xf32, #tpu.memory_space<vmem>>, vector<1x8x1xf32>
    %47 = vector.shape_cast %46 : vector<1x8x1xf32> to vector<8x1xf32>
    %48 = arith.mulf %45, %47 : vector<8x1xf32>
    %c0_28 = arith.constant 0 : index
    %c0_29 = arith.constant 0 : index
    %c0_30 = arith.constant 0 : index
    %49 = vector.load %arg3[%c0_28, %c0_29, %c0_30] : memref<1x9x1xf32, #tpu.memory_space<vmem>>, vector<1x9x1xf32>
    %50 = vector.shape_cast %49 : vector<1x9x1xf32> to vector<9x1xf32>
    %51 = vector.extract_strided_slice %50 {offsets = [0, 0], sizes = [8, 1], strides = [1, 1]} : vector<9x1xf32> to vector<8x1xf32>
    %52 = arith.addf %48, %51 : vector<8x1xf32>
    %53 = vector.extract_strided_slice %50 {offsets = [8, 0], sizes = [1, 1], strides = [1, 1]} : vector<9x1xf32> to vector<1x1xf32>
    %54 = tpu.iota {dimensions = array<i32: 0>} : vector<8x8xi32>
    %55 = tpu.iota {dimensions = array<i32: 1>} : vector<8x8xi32>
    %56 = arith.cmpi slt, %54, %55 : vector<8x8xi32>
    %cst_31 = arith.constant 0.000000e+00 : f32
    %57 = vector.shape_cast %52 : vector<8x1xf32> to vector<8x1xf32>
    %58 = vector.broadcast %57 : vector<8x1xf32> to vector<8x8xf32>
    %59 = vector.broadcast %cst_31 : f32 to vector<8x8xf32>
    %60 = arith.select %56, %58, %59 : vector<8x8xi1>, vector<8x8xf32>
    %cst_32 = arith.constant dense<0.000000e+00> : vector<8xf32>
    %61 = vector.multi_reduction <add>, %60, %cst_32 [0] : vector<8x8xf32> to vector<8xf32>
    %62 = vector.shape_cast %61 : vector<8xf32> to vector<1x8xf32>
    %63 = arith.cmpi eq, %54, %55 : vector<8x8xi32>
    %cst_33 = arith.constant 0.000000e+00 : f32
    %64 = vector.shape_cast %52 : vector<8x1xf32> to vector<8x1xf32>
    %65 = vector.broadcast %64 : vector<8x1xf32> to vector<8x8xf32>
    %66 = vector.broadcast %cst_33 : f32 to vector<8x8xf32>
    %67 = arith.select %63, %65, %66 : vector<8x8xi1>, vector<8x8xf32>
    %cst_34 = arith.constant dense<0.000000e+00> : vector<8xf32>
    %68 = vector.multi_reduction <add>, %67, %cst_34 [0] : vector<8x8xf32> to vector<8xf32>
    %69 = vector.shape_cast %68 : vector<8xf32> to vector<1x8xf32>
    %70 = arith.addf %62, %69 : vector<1x8xf32>
    %71 = math.floor %62 : vector<1x8xf32>
    %72 = math.floor %70 : vector<1x8xf32>
    %73 = arith.cmpf ogt, %72, %71 : vector<1x8xf32>
    %74 = arith.subf %70, %71 : vector<1x8xf32>
    %75 = arith.subf %62, %71 : vector<1x8xf32>
    %cst_35 = arith.constant 1.000000e+00 : f32
    %76 = vector.broadcast %cst_35 : f32 to vector<1x8xf32>
    %77 = arith.subf %76, %75 : vector<1x8xf32>
    %78 = arith.select %73, %77, %69 : vector<1x8xi1>, vector<1x8xf32>
    %79 = arith.subf %69, %78 : vector<1x8xf32>
    %80 = vector.extract_strided_slice %70 {offsets = [0, 7], sizes = [1, 1], strides = [1, 1]} : vector<1x8xf32> to vector<1x1xf32>
    %81 = arith.addf %80, %53 : vector<1x1xf32>
    %82 = math.floor %80 : vector<1x1xf32>
    %83 = arith.subf %81, %82 : vector<1x1xf32>
    %84 = math.floor %81 : vector<1x1xf32>
    %85 = arith.fptosi %84 : vector<1x1xf32> to vector<1x1xi32>
    %86 = arith.fptosi %71 : vector<1x8xf32> to vector<1x8xi32>
    %87 = tpu.iota {dimensions = array<i32: 0>} : vector<9x8xi32>
    %88 = vector.broadcast %86 : vector<1x8xi32> to vector<9x8xi32>
    %89 = arith.cmpi eq, %87, %88 : vector<9x8xi32>
    %cst_36 = arith.constant 0.000000e+00 : f32
    %90 = vector.shape_cast %78 : vector<1x8xf32> to vector<1x8xf32>
    %91 = vector.broadcast %90 : vector<1x8xf32> to vector<9x8xf32>
    %92 = vector.broadcast %cst_36 : f32 to vector<9x8xf32>
    %93 = arith.select %89, %91, %92 : vector<9x8xi1>, vector<9x8xf32>
    %c1_i32 = arith.constant 1 : i32
    %94 = vector.broadcast %c1_i32 : i32 to vector<1x8xi32>
    %95 = arith.addi %86, %94 : vector<1x8xi32>
    %96 = vector.broadcast %95 : vector<1x8xi32> to vector<9x8xi32>
    %97 = arith.cmpi eq, %87, %96 : vector<9x8xi32>
    %cst_37 = arith.constant 0.000000e+00 : f32
    %98 = vector.shape_cast %79 : vector<1x8xf32> to vector<1x8xf32>
    %99 = vector.broadcast %98 : vector<1x8xf32> to vector<9x8xf32>
    %100 = vector.broadcast %cst_37 : f32 to vector<9x8xf32>
    %101 = arith.select %97, %99, %100 : vector<9x8xi1>, vector<9x8xf32>
    %102 = arith.addf %93, %101 : vector<9x8xf32>
    %103 = vector.broadcast %85 : vector<1x1xi32> to vector<9x8xi32>
    %104 = arith.cmpi slt, %87, %103 : vector<9x8xi32>
    %cst_38 = arith.constant 0.000000e+00 : f32
    %105 = vector.broadcast %cst_38 : f32 to vector<9x8xf32>
    %106 = arith.select %104, %102, %105 : vector<9x8xi1>, vector<9x8xf32>
    %cst_39 = arith.constant dense<0.000000e+00> : vector<9x32xf32>
    %107 = tpu.matmul %106, %1, %cst_39 {dimension_numbers = #tpu.dot_dimension_numbers<[1], [0], [0], [1], [0, 0, 1, 1], [], []>} : vector<9x8xf32>, vector<8x32xf32>, vector<9x32xf32> -> vector<9x32xf32>
    %c0_40 = arith.constant 0 : index
    %c0_41 = arith.constant 0 : index
    %c0_42 = arith.constant 0 : index
    %108 = vector.load %arg8[%c0_40, %c0_41, %c0_42] : memref<1x9x32xf32, #tpu.memory_space<vmem>>, vector<1x9x32xf32>
    %109 = vector.shape_cast %108 : vector<1x9x32xf32> to vector<9x32xf32>
    %110 = vector.shape_cast %107 : vector<9x32xf32> to vector<1x9x32xf32>
    tpu.vector_store %arg8[%c0_40, %c0_41, %c0_42], %110 {strides = array<i32>} : memref<1x9x32xf32, #tpu.memory_space<vmem>>, vector<1x9x32xf32>,
    %c0_43 = arith.constant 0 : index
    %c0_44 = arith.constant 0 : index
    %c0_45 = arith.constant 0 : index
    %111 = vector.load %arg9[%c0_43, %c0_44, %c0_45] : memref<1x1x9xf32, #tpu.memory_space<vmem>>, vector<1x1x8xf32>
    %112 = vector.shape_cast %111 : vector<1x1x8xf32> to vector<1x8xf32>
    %113 = vector.shape_cast %69 : vector<1x8xf32> to vector<1x1x8xf32>
    tpu.vector_store %arg9[%c0_43, %c0_44, %c0_45], %113 {strides = array<i32>} : memref<1x1x9xf32, #tpu.memory_space<vmem>>, vector<1x1x8xf32>,
    %c0_46 = arith.constant 0 : index
    %c0_47 = arith.constant 0 : index
    %c8 = arith.constant 8 : index
    %114 = vector.load %arg9[%c0_46, %c0_47, %c8] : memref<1x1x9xf32, #tpu.memory_space<vmem>>, vector<1x1x1xf32>
    %115 = vector.shape_cast %114 : vector<1x1x1xf32> to vector<1x1xf32>
    %116 = vector.shape_cast %53 : vector<1x1xf32> to vector<1x1x1xf32>
    tpu.vector_store %arg9[%c0_46, %c0_47, %c8], %116 {strides = array<i32>} : memref<1x1x9xf32, #tpu.memory_space<vmem>>, vector<1x1x1xf32>,
    %c0_48 = arith.constant 0 : index
    %c0_49 = arith.constant 0 : index
    %c0_50 = arith.constant 0 : index
    %117 = vector.load %arg10[%c0_48, %c0_49, %c0_50] : memref<1x1x9xf32, #tpu.memory_space<vmem>>, vector<1x1x8xf32>
    %118 = vector.shape_cast %117 : vector<1x1x8xf32> to vector<1x8xf32>
    %119 = vector.shape_cast %74 : vector<1x8xf32> to vector<1x1x8xf32>
    tpu.vector_store %arg10[%c0_48, %c0_49, %c0_50], %119 {strides = array<i32>} : memref<1x1x9xf32, #tpu.memory_space<vmem>>, vector<1x1x8xf32>,
    %c0_51 = arith.constant 0 : index
    %c0_52 = arith.constant 0 : index
    %c8_53 = arith.constant 8 : index
    %120 = vector.load %arg10[%c0_51, %c0_52, %c8_53] : memref<1x1x9xf32, #tpu.memory_space<vmem>>, vector<1x1x1xf32>
    %121 = vector.shape_cast %120 : vector<1x1x1xf32> to vector<1x1xf32>
    %122 = vector.shape_cast %83 : vector<1x1xf32> to vector<1x1x1xf32>
    tpu.vector_store %arg10[%c0_51, %c0_52, %c8_53], %122 {strides = array<i32>} : memref<1x1x9xf32, #tpu.memory_space<vmem>>, vector<1x1x1xf32>,
    return
  }
  func.func @transform_0(%arg0: i32) -> (i32, i32, i32) {
    %c0_i32 = arith.constant 0 : i32
    %c0_i32_0 = arith.constant 0 : i32
    %c0_i32_1 = arith.constant 0 : i32
    return %arg0, %c0_i32, %c0_i32_0 : i32, i32, i32
  }
  func.func @transform_1(%arg0: i32) -> (i32, i32, i32) {
    %c0_i32 = arith.constant 0 : i32
    %c0_i32_0 = arith.constant 0 : i32
    %c0_i32_1 = arith.constant 0 : i32
    return %arg0, %c0_i32, %c0_i32_0 : i32, i32, i32
  }
  func.func @transform_2(%arg0: i32) -> (i32, i32, i32) {
    %c0_i32 = arith.constant 0 : i32
    %c0_i32_0 = arith.constant 0 : i32
    %c0_i32_1 = arith.constant 0 : i32
    return %arg0, %c0_i32, %c0_i32_0 : i32, i32, i32
  }
  func.func @transform_3(%arg0: i32) -> (i32, i32) {
    %c0_i32 = arith.constant 0 : i32
    %c0_i32_0 = arith.constant 0 : i32
    %c0_i32_1 = arith.constant 0 : i32
    return %c0_i32, %c0_i32_0 : i32, i32
  }
  func.func @transform_4(%arg0: i32) -> (i32, i32) {
    %c0_i32 = arith.constant 0 : i32
    %c0_i32_0 = arith.constant 0 : i32
    %c0_i32_1 = arith.constant 0 : i32
    return %c0_i32, %c0_i32_0 : i32, i32
  }
  func.func @transform_5(%arg0: i32) -> (i32, i32) {
    %c0_i32 = arith.constant 0 : i32
    %c0_i32_0 = arith.constant 0 : i32
    %c0_i32_1 = arith.constant 0 : i32
    return %c0_i32, %c0_i32_0 : i32, i32
  }
  func.func @transform_6(%arg0: i32) -> (i32, i32) {
    %c0_i32 = arith.constant 0 : i32
    %c0_i32_0 = arith.constant 0 : i32
    %c0_i32_1 = arith.constant 0 : i32
    return %c0_i32, %c0_i32_0 : i32, i32
  }
  func.func @transform_7(%arg0: i32) -> (i32, i32, i32) {
    %c0_i32 = arith.constant 0 : i32
    %c0_i32_0 = arith.constant 0 : i32
    %c0_i32_1 = arith.constant 0 : i32
    return %arg0, %c0_i32, %c0_i32_0 : i32, i32, i32
  }
  func.func @transform_8(%arg0: i32) -> (i32, i32, i32) {
    %c0_i32 = arith.constant 0 : i32
    %c0_i32_0 = arith.constant 0 : i32
    %c0_i32_1 = arith.constant 0 : i32
    return %arg0, %c0_i32, %c0_i32_0 : i32, i32, i32
  }
  func.func @transform_9(%arg0: i32) -> (i32, i32, i32) {
    %c0_i32 = arith.constant 0 : i32
    %c0_i32_0 = arith.constant 0 : i32
    %c0_i32_1 = arith.constant 0 : i32
    return %arg0, %c0_i32, %c0_i32_0 : i32, i32, i32
  }
}

</mosaic_0001>

<llo_original>
// kernel: cif_predictor_forward.1
$region0: #{cif_predictor_forward.1}
  #allocation0 [shape = 'u32[]', space=smem, size = 0x4, offset = 0x4, fixed_abs, tag = 'smem constant byte address 0x4 - core index']
  #allocation1 [shape = 'u32[144,128]{1,0:T(1,128)}', space=vmem, size = 0x12000, scoped, tag = 'internal scratch']
  #allocation2 [shape = 'f32[10,32]{1,0:T(8,128)}', space=vmem, size = 0x2000, scoped, tag = 'scratch operand']
  #allocation3 [shape = 'f32[1,1]{1,0:T(1,128)S(1)}', space=vmem, size = 0x200, scoped, tag = 'scoped memory for cif_predictor_forward.1']
  %s0 = inlined_call_operand.vmem [shape: f32[2,8,32], index: 0, kind: input, shape index: {}]
  %s1 = inlined_call_operand.vmem [shape: f32[2,8,1], index: 1, kind: input, shape index: {}]
  %s2 = inlined_call_operand.vmem [shape: f32[2,9,1], index: 2, kind: input, shape index: {}]
  %s3 = inlined_call_operand.vmem [shape: f32[3,32], index: 3, kind: input, shape index: {}]
  %s4 = inlined_call_operand.vmem [shape: f32[1,32], index: 4, kind: input, shape index: {}]
  %s5 = inlined_call_operand.vmem [shape: f32[1,32], index: 5, kind: input, shape index: {}]
  %s6 = inlined_call_operand.<no memory space> [shape: f32[1,1], index: 6, kind: input, shape index: {}]
  %s7 = inlined_call_operand.vmem [shape: f32[2,9,32], index: 7, kind: output, shape index: {0}]
  %s8 = inlined_call_operand.vmem [shape: f32[2,1,9], index: 8, kind: output, shape index: {1}]
  %s9 = inlined_call_operand.hbm [shape: f32[2,1,9], index: 9, kind: output, shape index: {2}]
  %10 = xla_tuple %s7, %s8, %s9
  %s11 = sld [smem:[#allocation0]]
  $region77: #{cif_predictor_forward.1} parent=0
    _
  %s13 = ssub.s32 1, %s11
  %s14 = scalar_select 0, %s13, %s11
  %v15 = vstv %s6
  %16 = vst [vmem:[#allocation3] sm:$0x1] %v15
  $region1: #{cif_predictor_forward.1} parent=0
    #allocation4 [shape = 'u8[1024]{0}', space=vmem, size = 0x400, scoped, tag = 'output window, operand 2']
    #allocation5 [shape = 's32[2]{0}', space=sflag, size = 0x8, scoped, tag = 'scoped memory for cif_predictor_forward.1']
    %17 = vsyncpa [#allocation5], 0
    %s18 = scalar_lea.sflag [#allocation5], 1
    %19 = vsyncpa %s18, 0
    loop: start=0, step=1, limit=4
    $region2: #{cif_predictor_forward.1} parent=1 // loop_pre_header
      _
    $region3: #{cif_predictor_forward.1} parent=1 // loop_header
      %s21 = sphi 0, %s25
      %p22 = scmp.ge.s32.totalorder %s21, 4
      %s31 = sphi 0, %s33
      %s34 = sphi 0, %s31
      %s35 = sphi 0, %s34
      %s51 = sphi 0, %s35
      %s57 = sphi 0, %s59
      %s60 = sphi 0, %s57
      %s61 = sphi 0, %s60
      %s77 = sphi 0, %s61
      %s83 = sphi 0, %s85
      %s86 = sphi 0, %s83
      %s87 = sphi 0, %s86
      %s103 = sphi 0, %s87
      %s107 = sphi 0, %s107
      %s109 = sphi 0, %s107
      %s110 = sphi 0, %s109
      %s124 = sphi 0, %s110
      %s128 = sphi 0, %s128
      %s130 = sphi 0, %s128
      %s131 = sphi 0, %s130
      %s145 = sphi 0, %s131
      %s149 = sphi 0, %s149
      %s151 = sphi 0, %s149
      %s152 = sphi 0, %s151
      %s166 = sphi 0, %s152
      %s170 = sphi 0, %s170
      %s172 = sphi 0, %s170
      %s173 = sphi 0, %s172
      %s187 = sphi 0, %s173
      %s193 = sphi 0, %s195
      %s196 = sphi 0, %s193
      %s197 = sphi 0, %s196
      %s213 = sphi 0, %s197
      %s219 = sphi 0, %s221
      %s222 = sphi 0, %s219
      %s223 = sphi 0, %s222
      %s239 = sphi 0, %s223
      %s245 = sphi 0, %s247
      %s248 = sphi 0, %s245
      %s249 = sphi 0, %s248
      %s265 = sphi 0, %s249
    $region4: #{cif_predictor_forward.1} parent=1 // loop_header_branch
      %24 = sbr.rel (%p22) target = $region8
    $region5: #{cif_predictor_forward.1} parent=1 // loop_body
      %s26 = ssub.s32 %s21, 1
      %s27 = ssub.s32 %s21, 2
      %s28 = sadd.s32 %s21, 1
      %s29 = ssub.s32 %s21, %s28
      %p30 = scmp.eq.s32.totalorder %s29, 0
      %s32 = sadd.s32 %s31, 1
      %s33 = scalar_select %p30, %s31, %s32
      %p36 = pneg %p30
      %p37 = scmp.eq.s32.totalorder %s21, 1
      %p38 = por %p36, %p37
      %p39 = scmp.ne.s32.totalorder %s31, %s34
      %p40 = scmp.eq.s32.totalorder %s21, 0
      %p41 = por %p39, %p40
      %p42 = scmp.ne.s32.totalorder %s31, %s34
      %p43 = scmp.eq.s32.totalorder %s26, 1
      %p44 = por %p42, %p43
      %p45 = scmp.ne.s32.totalorder %s34, %s35
      %p46 = scmp.eq.s32.totalorder %s26, 0
      %p47 = por %p45, %p46
      %p48 = scmp.ne.s32.totalorder %s34, %s35
      %p49 = scmp.eq.s32.totalorder %s27, 1
      %p50 = por %p48, %p49
      %p52 = scmp.ne.s32.totalorder %s35, %s51
      %p53 = scmp.eq.s32.totalorder %s27, 0
      %p54 = por %p52, %p53
      %s55 = ssub.s32 %s21, %s28
      %p56 = scmp.eq.s32.totalorder %s55, 0
      %s58 = sadd.s32 %s57, 1
      %s59 = scalar_select %p56, %s57, %s58
      %p62 = pneg %p56
      %p63 = scmp.eq.s32.totalorder %s21, 1
      %p64 = por %p62, %p63
      %p65 = scmp.ne.s32.totalorder %s57, %s60
      %p66 = scmp.eq.s32.totalorder %s21, 0
      %p67 = por %p65, %p66
      %p68 = scmp.ne.s32.totalorder %s57, %s60
      %p69 = scmp.eq.s32.totalorder %s26, 1
      %p70 = por %p68, %p69
      %p71 = scmp.ne.s32.totalorder %s60, %s61
      %p72 = scmp.eq.s32.totalorder %s26, 0
      %p73 = por %p71, %p72
      %p74 = scmp.ne.s32.totalorder %s60, %s61
      %p75 = scmp.eq.s32.totalorder %s27, 1
      %p76 = por %p74, %p75
      %p78 = scmp.ne.s32.totalorder %s61, %s77
      %p79 = scmp.eq.s32.totalorder %s27, 0
      %p80 = por %p78, %p79
      %s81 = ssub.s32 %s21, %s28
      %p82 = scmp.eq.s32.totalorder %s81, 0
      %s84 = sadd.s32 %s83, 1
      %s85 = scalar_select %p82, %s83, %s84
      %p88 = pneg %p82
      %p89 = scmp.eq.s32.totalorder %s21, 1
      %p90 = por %p88, %p89
      %p91 = scmp.ne.s32.totalorder %s83, %s86
      %p92 = scmp.eq.s32.totalorder %s21, 0
      %p93 = por %p91, %p92
      %p94 = scmp.ne.s32.totalorder %s83, %s86
      %p95 = scmp.eq.s32.totalorder %s26, 1
      %p96 = por %p94, %p95
      %p97 = scmp.ne.s32.totalorder %s86, %s87
      %p98 = scmp.eq.s32.totalorder %s26, 0
      %p99 = por %p97, %p98
      %p100 = scmp.ne.s32.totalorder %s86, %s87
      %p101 = scmp.eq.s32.totalorder %s27, 1
      %p102 = por %p100, %p101
      %p104 = scmp.ne.s32.totalorder %s87, %s103
      %p105 = scmp.eq.s32.totalorder %s27, 0
      %p106 = por %p104, %p105
      %s108 = sadd.s32 %s107, 1
      %p111 = scmp.eq.s32.totalorder %s21, 1
      %p112 = scmp.ne.s32.totalorder %s107, %s109
      %p113 = scmp.eq.s32.totalorder %s21, 0
      %p114 = por %p112, %p113
      %p115 = scmp.ne.s32.totalorder %s107, %s109
      %p116 = scmp.eq.s32.totalorder %s26, 1
      %p117 = por %p115, %p116
      %p118 = scmp.ne.s32.totalorder %s109, %s110
      %p119 = scmp.eq.s32.totalorder %s26, 0
      %p120 = por %p118, %p119
      %p121 = scmp.ne.s32.totalorder %s109, %s110
      %p122 = scmp.eq.s32.totalorder %s27, 1
      %p123 = por %p121, %p122
      %p125 = scmp.ne.s32.totalorder %s110, %s124
      %p126 = scmp.eq.s32.totalorder %s27, 0
      %p127 = por %p125, %p126
      %s129 = sadd.s32 %s128, 1
      %p132 = scmp.eq.s32.totalorder %s21, 1
      %p133 = scmp.ne.s32.totalorder %s128, %s130
      %p134 = scmp.eq.s32.totalorder %s21, 0
      %p135 = por %p133, %p134
      %p136 = scmp.ne.s32.totalorder %s128, %s130
      %p137 = scmp.eq.s32.totalorder %s26, 1
      %p138 = por %p136, %p137
      %p139 = scmp.ne.s32.totalorder %s130, %s131
      %p140 = scmp.eq.s32.totalorder %s26, 0
      %p141 = por %p139, %p140
      %p142 = scmp.ne.s32.totalorder %s130, %s131
      %p143 = scmp.eq.s32.totalorder %s27, 1
      %p144 = por %p142, %p143
      %p146 = scmp.ne.s32.totalorder %s131, %s145
      %p147 = scmp.eq.s32.totalorder %s27, 0
      %p148 = por %p146, %p147
      %s150 = sadd.s32 %s149, 1
      %p153 = scmp.eq.s32.totalorder %s21, 1
      %p154 = scmp.ne.s32.totalorder %s149, %s151
      %p155 = scmp.eq.s32.totalorder %s21, 0
      %p156 = por %p154, %p155
      %p157 = scmp.ne.s32.totalorder %s149, %s151
      %p158 = scmp.eq.s32.totalorder %s26, 1
      %p159 = por %p157, %p158
      %p160 = scmp.ne.s32.totalorder %s151, %s152
      %p161 = scmp.eq.s32.totalorder %s26, 0
      %p162 = por %p160, %p161
      %p163 = scmp.ne.s32.totalorder %s151, %s152
      %p164 = scmp.eq.s32.totalorder %s27, 1
      %p165 = por %p163, %p164
      %p167 = scmp.ne.s32.totalorder %s152, %s166
      %p168 = scmp.eq.s32.totalorder %s27, 0
      %p169 = por %p167, %p168
      %s171 = sadd.s32 %s170, 1
      %p174 = scmp.eq.s32.totalorder %s21, 1
      %p175 = scmp.ne.s32.totalorder %s170, %s172
      %p176 = scmp.eq.s32.totalorder %s21, 0
      %p177 = por %p175, %p176
      %p178 = scmp.ne.s32.totalorder %s170, %s172
      %p179 = scmp.eq.s32.totalorder %s26, 1
      %p180 = por %p178, %p179
      %p181 = scmp.ne.s32.totalorder %s172, %s173
      %p182 = scmp.eq.s32.totalorder %s26, 0
      %p183 = por %p181, %p182
      %p184 = scmp.ne.s32.totalorder %s172, %s173
      %p185 = scmp.eq.s32.totalorder %s27, 1
      %p186 = por %p184, %p185
      %p188 = scmp.ne.s32.totalorder %s173, %s187
      %p189 = scmp.eq.s32.totalorder %s27, 0
      %p190 = por %p188, %p189
      %s191 = ssub.s32 %s21, %s28
      %p192 = scmp.eq.s32.totalorder %s191, 0
      %s194 = sadd.s32 %s193, 1
      %s195 = scalar_select %p192, %s193, %s194
      %p198 = pneg %p192
      %p199 = scmp.eq.s32.totalorder %s21, 1
      %p200 = por %p198, %p199
      %p201 = scmp.ne.s32.totalorder %s193, %s196
      %p202 = scmp.eq.s32.totalorder %s21, 0
      %p203 = por %p201, %p202
      %p204 = scmp.ne.s32.totalorder %s193, %s196
      %p205 = scmp.eq.s32.totalorder %s26, 1
      %p206 = por %p204, %p205
      %p207 = scmp.ne.s32.totalorder %s196, %s197
      %p208 = scmp.eq.s32.totalorder %s26, 0
      %p209 = por %p207, %p208
      %p210 = scmp.ne.s32.totalorder %s196, %s197
      %p211 = scmp.eq.s32.totalorder %s27, 1
      %p212 = por %p210, %p211
      %p214 = scmp.ne.s32.totalorder %s197, %s213
      %p215 = scmp.eq.s32.totalorder %s27, 0
      %p216 = por %p214, %p215
      %s217 = ssub.s32 %s21, %s28
      %p218 = scmp.eq.s32.totalorder %s217, 0
      %s220 = sadd.s32 %s219, 1
      %s221 = scalar_select %p218, %s219, %s220
      %p224 = pneg %p218
      %p225 = scmp.eq.s32.totalorder %s21, 1
      %p226 = por %p224, %p225
      %p227 = scmp.ne.s32.totalorder %s219, %s222
      %p228 = scmp.eq.s32.totalorder %s21, 0
      %p229 = por %p227, %p228
      %p230 = scmp.ne.s32.totalorder %s219, %s222
      %p231 = scmp.eq.s32.totalorder %s26, 1
      %p232 = por %p230, %p231
      %p233 = scmp.ne.s32.totalorder %s222, %s223
      %p234 = scmp.eq.s32.totalorder %s26, 0
      %p235 = por %p233, %p234
      %p236 = scmp.ne.s32.totalorder %s222, %s223
      %p237 = scmp.eq.s32.totalorder %s27, 1
      %p238 = por %p236, %p237
      %p240 = scmp.ne.s32.totalorder %s223, %s239
      %p241 = scmp.eq.s32.totalorder %s27, 0
      %p242 = por %p240, %p241
      %s243 = ssub.s32 %s21, %s28
      %p244 = scmp.eq.s32.totalorder %s243, 0
      %s246 = sadd.s32 %s245, 1
      %s247 = scalar_select %p244, %s245, %s246
      %p250 = pneg %p244
      %p251 = scmp.eq.s32.totalorder %s21, 1
      %p252 = por %p250, %p251
      %p253 = scmp.ne.s32.totalorder %s245, %s248
      %p254 = scmp.eq.s32.totalorder %s21, 0
      %p255 = por %p253, %p254
      %p256 = scmp.ne.s32.totalorder %s245, %s248
      %p257 = scmp.eq.s32.totalorder %s26, 1
      %p258 = por %p256, %p257
      %p259 = scmp.ne.s32.totalorder %s248, %s249
      %p260 = scmp.eq.s32.totalorder %s26, 0
      %p261 = por %p259, %p260
      %p262 = scmp.ne.s32.totalorder %s248, %s249
      %p263 = scmp.eq.s32.totalorder %s27, 1
      %p264 = por %p262, %p263
      %p266 = scmp.ne.s32.totalorder %s249, %s265
      %p267 = scmp.eq.s32.totalorder %s27, 0
      %p268 = por %p266, %p267
      %p269 = scmp.le.s32.totalorder 1, %s21
      %p270 = scmp.lt.s32.totalorder %s21, 3
      %p271 = pnand %p269, %p270
      %p272 = pneg %p271
      // Predicated region
      $region9: #{cif_predictor_forward.1} parent=5 // pred_check
        _
      $region10: #{cif_predictor_forward.1} parent=5 // pred_check_branch
        %274 = sbr.rel (%p271) target = $region12
      $region11: #{cif_predictor_forward.1} parent=5 // pred_region
        %s275 = ssub.s32 %s21, 1
        // Predicated region
        $region13: #{cif_predictor_forward.1} parent=11 // pred_check
          %p276 = pneg %p120
        $region14: #{cif_predictor_forward.1} parent=11 // pred_check_branch
          %278 = sbr.rel (%p276) target = $region16
        $region15: #{cif_predictor_forward.1} parent=11 // pred_region
          _
        $region16: #{cif_predictor_forward.1} parent=11 // pred_fallthru
          _
        // Predicated region
        $region17: #{cif_predictor_forward.1} parent=11 // pred_check
          %p279 = pneg %p141
        $region18: #{cif_predictor_forward.1} parent=11 // pred_check_branch
          %281 = sbr.rel (%p279) target = $region20
        $region19: #{cif_predictor_forward.1} parent=11 // pred_region
          _
        $region20: #{cif_predictor_forward.1} parent=11 // pred_fallthru
          _
        // Predicated region
        $region21: #{cif_predictor_forward.1} parent=11 // pred_check
          %p282 = pneg %p162
        $region22: #{cif_predictor_forward.1} parent=11 // pred_check_branch
          %284 = sbr.rel (%p282) target = $region24
        $region23: #{cif_predictor_forward.1} parent=11 // pred_region
          _
        $region24: #{cif_predictor_forward.1} parent=11 // pred_fallthru
          _
        // Predicated region
        $region25: #{cif_predictor_forward.1} parent=11 // pred_check
          %p285 = pneg %p183
        $region26: #{cif_predictor_forward.1} parent=11 // pred_check_branch
          %287 = sbr.rel (%p285) target = $region28
        $region27: #{cif_predictor_forward.1} parent=11 // pred_region
          _
        $region28: #{cif_predictor_forward.1} parent=11 // pred_fallthru
          _
      $region12: #{cif_predictor_forward.1} parent=5 // pred_fallthru
        _
      %p288 = scmp.lt.s32.totalorder %s21, 2
      // Predicated region
      $region29: #{cif_predictor_forward.1} parent=5 // pred_check
        %p289 = pneg %p288
      $region30: #{cif_predictor_forward.1} parent=5 // pred_check_branch
        %291 = sbr.rel (%p289) target = $region32
      $region31: #{cif_predictor_forward.1} parent=5 // pred_region
        // Predicated region
        $region33: #{cif_predictor_forward.1} parent=31 // pred_check
          %p292 = pneg %p41
        $region34: #{cif_predictor_forward.1} parent=31 // pred_check_branch
          %294 = sbr.rel (%p292) target = $region36
        $region35: #{cif_predictor_forward.1} parent=31 // pred_region
          %p295 = scmp.lt.s32.totalorder %s21, 1
          %s296 = scalar_select %p295, %s21, 1
          %s297 = smul.addr %s296, 8
          %s298 = scalar_lea.vmem %s0, %s297
        $region36: #{cif_predictor_forward.1} parent=31 // pred_fallthru
          _
        // Predicated region
        $region37: #{cif_predictor_forward.1} parent=31 // pred_check
          %p299 = pneg %p67
        $region38: #{cif_predictor_forward.1} parent=31 // pred_check_branch
          %301 = sbr.rel (%p299) target = $region40
        $region39: #{cif_predictor_forward.1} parent=31 // pred_region
          %p302 = scmp.lt.s32.totalorder %s21, 1
          %s303 = scalar_select %p302, %s21, 1
          %s304 = smul.addr %s303, 8
          %s305 = scalar_lea.vmem %s1, %s304
        $region40: #{cif_predictor_forward.1} parent=31 // pred_fallthru
          _
        // Predicated region
        $region41: #{cif_predictor_forward.1} parent=31 // pred_check
          %p306 = pneg %p93
        $region42: #{cif_predictor_forward.1} parent=31 // pred_check_branch
          %308 = sbr.rel (%p306) target = $region44
        $region43: #{cif_predictor_forward.1} parent=31 // pred_region
          %p309 = scmp.lt.s32.totalorder %s21, 1
          %s310 = scalar_select %p309, %s21, 1
          %s311 = smul.addr %s310, 2
          %s312 = smul.addr %s311, 8
          %s313 = scalar_lea.vmem %s2, %s312
        $region44: #{cif_predictor_forward.1} parent=31 // pred_fallthru
          _
      $region32: #{cif_predictor_forward.1} parent=5 // pred_fallthru
        _
      %p314 = scmp.le.s32.totalorder 1, %s21
      %p315 = scmp.lt.s32.totalorder %s21, 3
      %p316 = pnand %p314, %p315
      %p317 = pneg %p316
      // Predicated region
      $region45: #{cif_predictor_forward.1} parent=5 // pred_check
        _
      $region46: #{cif_predictor_forward.1} parent=5 // pred_check_branch
        %319 = sbr.rel (%p316) target = $region48
      $region47: #{cif_predictor_forward.1} parent=5 // pred_region
        %s320 = ssub.s32 %s21, 1
        %p321 = scmp.lt.s32.totalorder %s26, 1
        %s322 = scalar_select %p321, %s26, 1
        %s323 = smul.addr %s322, 8
        %s324 = scalar_lea.vmem %s0, %s323
        %p325 = pneg %p47
        %p326 = pneg %p44
        %p327 = scmp.lt.s32.totalorder %s26, 1
        %s328 = scalar_select %p327, %s26, 1
        %s329 = smul.addr %s328, 8
        %s330 = scalar_lea.vmem %s1, %s329
        %p331 = pneg %p73
        %p332 = pneg %p70
        %p333 = scmp.lt.s32.totalorder %s26, 1
        %s334 = scalar_select %p333, %s26, 1
        %s335 = smul.addr %s334, 2
        %s336 = smul.addr %s335, 8
        %s337 = scalar_lea.vmem %s2, %s336
        %p338 = pneg %p99
        %p339 = pneg %p96
        %p340 = pneg %p120
        %p341 = pneg %p117
        %p342 = pneg %p141
        %p343 = pneg %p138
        %p344 = pneg %p162
        %p345 = pneg %p159
        %p346 = pneg %p183
        %p347 = pneg %p180
        %p348 = pneg %p209
        %p349 = pneg %p206
        %p350 = scmp.lt.s32.totalorder %s26, 1
        %s351 = scalar_select %p350, %s26, 1
        %s352 = smul.addr %s351, 2
        %s353 = smul.addr %s352, 8
        %s354 = scalar_lea.vmem %s7, %s353
        %p355 = pneg %p235
        %p356 = pneg %p232
        %p357 = scmp.lt.s32.totalorder %s26, 1
        %s358 = scalar_select %p357, %s26, 1
        %s359 = scalar_lea.vmem %s8, %s358
        %p360 = pneg %p261
        %p361 = pneg %p258
        %s362 = sand.u32 %s248, 1
        %s363 = scalar_lea.sflag [#allocation5], %s362
        %s364 = sand.u32 %s248, 1
        %s365 = scalar_lea.vmem [#allocation4], %s364
        %p366 = scmp.lt.s32.totalorder %s26, 1
        %s367 = scalar_select %p366, %s26, 1
        %s368 = smul.addr %s367, 8
        %s369 = scalar_lea.vmem %s0, %s368
        %p370 = scmp.lt.s32.totalorder %s26, 1
        %s371 = scalar_select %p370, %s26, 1
        %s372 = smul.addr %s371, 8
        %s373 = scalar_lea.vmem %s1, %s372
        %p374 = scmp.lt.s32.totalorder %s26, 1
        %s375 = scalar_select %p374, %s26, 1
        %s376 = smul.addr %s375, 2
        %s377 = smul.addr %s376, 8
        %s378 = scalar_lea.vmem %s2, %s377
        %p379 = scmp.lt.s32.totalorder %s26, 1
        %s380 = scalar_select %p379, %s26, 1
        %s381 = smul.addr %s380, 2
        %s382 = smul.addr %s381, 8
        %s383 = scalar_lea.vmem %s7, %s382
        %p384 = scmp.lt.s32.totalorder %s26, 1
        %s385 = scalar_select %p384, %s26, 1
        %s386 = scalar_lea.vmem %s8, %s385
        %v387 = vld [vmem:[%s369] sm:$0xff]
        %vm388 = vcmask 253952
        %389 = vst.msk [vmem:[#allocation2] sm:$0x1] %vm388, 0.0
        %vm390 = vcmask 261120
        %391 = vst.msk [vmem:[#allocation2 + $0x1] sm:$0xff] %vm390, %v387
        %392 = vst.msk [vmem:[#allocation2 + $0x9] sm:$0x1] %vm388, 0.0
        %v393 = vld [vmem:[#allocation2] sm:$0xff]
        %v394 = vld [vmem:[#allocation2 + $0x8] sm:$0x3]
        %v395 = vld [vmem:[%s4] sm:$0x1]
        %v396 = vld [vmem:[%s3] sm:$0x1]
        %v397 = vlaneseq
        %v398 = vshrl.u32 %v397, 7
        %v399 = vsub.s32 0, %v398
        %v400 = vrot.slane %v396, %v399
        %v401 = vmul.f32 %v400, %v393
        %v403 = vlaneseq
        %v404 = vshrl.u32 %v403, 7
        %v405 = vsub.s32 0, %v404
        %v406 = vrot.slane %v395, %v405
        %v408 = vadd.f32 %v406, %v401
        %v409 = vld [vmem:[%s3 + $0x1] sm:$0x1]
        %v410 = vlaneseq
        %v411 = vshrl.u32 %v410, 7
        %v412 = vsub.s32 0, %v411
        %v413 = vrot.slane %v409, %v412
        %v414 = vmul.f32 %v413, %v393
        %v415 = vmul.f32 %v413, %v394
        %vm418 = vcmask 1046528
        %v419 = vrot.slane %v414, 1
        %v420 = vrot.slane %v415, 1
        %v421 = vsel %vm418, %v419, %v420
        %v423 = vadd.f32 %v408, %v421
        %v424 = vld [vmem:[%s3 + $0x2] sm:$0x1]
        %v425 = vlaneseq
        %v426 = vshrl.u32 %v425, 7
        %v427 = vsub.s32 0, %v426
        %v428 = vrot.slane %v424, %v427
        %v429 = vmul.f32 %v428, %v393
        %v430 = vmul.f32 %v428, %v394
        %vm433 = vcmask 1045504
        %v434 = vrot.slane %v429, 2
        %v435 = vrot.slane %v430, 2
        %v436 = vsel %vm433, %v434, %v435
        %v438 = vadd.f32 %v423, %v436
        %v439 = vadd.f32 %v438, %v387
        %v440 = vmax.f32 %v439, 0.0
        %v441 = vld [vmem:[%s5] sm:$0x1]
        %v443 = vlaneseq
        %v444 = vshrl.u32 %v443, 7
        %v445 = vsub.s32 0, %v444
        %v446 = vrot.slane %v441, %v445
        %v448 = vmul.f32 %v440, %v446
        %v449 = vsel %vm390, %v448, 0.0
        %450 = vadd.xlane.f32.xlu0 %v449
        %v451 = vpop.xlane.xlu0 %450
        %v452 = vld [vmem:[#allocation3] sm:$0x1]
        %v454 = vlaneseq
        %v455 = vshrl.u32 %v454, 7
        %v456 = vsub.s32 0, %v455
        %v457 = vrot.slane %v452, %v456
        %v459 = vadd.f32 %v451, %v457
        %v460 = vxor.u32 %v459, 2147483648
        %v461 = vmul.f32 %v460, 1.442695
        %v462 = vpow.pop %v461
        %v463 = vadd.f32 %v462, 1.0
        %v464 = vrcp.pop %v463
        %v465 = vmul.f32 1.0, %v464
        %v466 = vmax.f32 %v465, 0.0
        %v467 = vld [vmem:[%s373] sm:$0xff]
        %v468 = vmul.f32 %v466, %v467
        %v469 = vld [vmem:[%s378] sm:$0xff]
        %v470 = vld [vmem:[%s378 + $0x8] sm:$0x1]
        %v471 = vadd.f32 %v468, %v469
        %v472 = vlaneseq
        %v473 = vshrl.u32 %v472, 7
        %v474 = vlaneseq
        %v475 = vand.u32 %v474, 127
        %vm476 = vcmp.lt.s32.totalorder %v473, %v475
        %478 = vset.pattern.permute.xlu0 0
        %479 = vperm.xlu0 %478, %v471
        %v480 = vpop.permute.xlu0 %479
        %v482 = vsel %vm476, %v480, 0.0
        %vm483 = vcmask 64512
        %v484 = vsel %vm483, %v482, 0.0
        %v485 = vrot.slane %v484, 4
        %v486 = vadd.f32 %v484, %v485
        %v487 = vrot.slane %v486, 2
        %v488 = vadd.f32 %v486, %v487
        %v489 = vrot.slane %v488, 1
        %v490 = vadd.f32 %v488, %v489
        %vm491 = vcmp.eq.s32.totalorder %v473, %v475
        %v492 = vsel %vm491, %v480, 0.0
        %v493 = vsel %vm483, %v492, 0.0
        %v494 = vrot.slane %v493, 4
        %v495 = vadd.f32 %v493, %v494
        %v496 = vrot.slane %v495, 2
        %v497 = vadd.f32 %v495, %v496
        %v498 = vrot.slane %v497, 1
        %v499 = vadd.f32 %v497, %v498
        %v500 = vadd.f32 %v490, %v499
        %v501 = vfloor.f32 %v490
        %v502 = vfloor.f32 %v500
        %vm503 = vcmp.gt.f32.partialorder %v502, %v501
        %v504 = vsub.f32 %v500, %v501
        %v505 = vsub.f32 %v490, %v501
        %v506 = vsub.f32 1.0, %v505
        %v507 = vsel %vm503, %v506, %v499
        %v508 = vsub.f32 %v499, %v507
        %510 = vrot.lane.b32.xlu0 %v470, 7
        %v511 = vpop.permute.xlu0 %510
        %v513 = vadd.f32 %v500, %v511
        %v514 = vsub.f32 %v513, %v502
        %v515 = vfloor.f32 %v513
        %v516 = vcvt.f32.s32.to.zero.pseudo %v515
        %v517 = vcvt.f32.s32.to.zero.pseudo %v501
        %v518 = vadd.s32 %v473, 8
        %vm519 = vcmp.eq.s32.totalorder %v473, %v517
        %vm520 = vcmp.eq.s32.totalorder %v518, %v517
        %v521 = vsel %vm519, %v507, 0.0
        %v522 = vsel %vm520, %v507, 0.0
        %v523 = vadd.s32 %v517, 1
        %vm524 = vcmp.eq.s32.totalorder %v473, %v523
        %vm525 = vcmp.eq.s32.totalorder %v518, %v523
        %v526 = vsel %vm524, %v508, 0.0
        %v527 = vsel %vm525, %v508, 0.0
        %v528 = vadd.f32 %v521, %v526
        %v529 = vadd.f32 %v522, %v527
        %530 = vrot.lane.b32.xlu0 %v516, 121
        %v531 = vpop.permute.xlu0 %530
        %s532 = vtos %v531
        %v533 = vstv %s532
        %vm534 = vcmp.lt.s32.totalorder %v473, %v533
        %vm535 = vcmp.lt.s32.totalorder %v518, %v533
        %v536 = vsel %vm534, %v528, 0.0
        %v537 = vsel %vm535, %v529, 0.0
        %v539 = vsel %vm483, %v536, 0
        %v542 = vsel %vm483, %v537, 0
        %544 = vmatprep.subr.mxu0 0.0
        %545 = vmatpush1.msra.mxu0 0.0
        %546 = vmatprep.subr.mxu0 0.0
        %547 = vmatpush1.msra.mxu0 0.0
        %548 = vmatprep.subr.mxu0 0.0
        %549 = vmatpush1.msra.mxu0 0.0
        %550 = vmatprep.subr.mxu0 0.0
        %551 = vmatpush1.msra.mxu0 0.0
        %552 = vmatprep.subr.mxu0 0.0
        %553 = vmatpush1.msra.mxu0 0.0
        %554 = vmatprep.subr.mxu0 0.0
        %555 = vmatpush1.msra.mxu0 0.0
        %556 = vmatprep.subr.mxu0 0.0
        %557 = vmatpush1.msra.mxu0 0.0
        %558 = vmatprep.subr.mxu0 0.0
        %559 = vmatpush1.msra.mxu0 0.0
        %560 = vmatprep.subr.mxu0 0.0
        %561 = vmatpush1.msra.mxu0 0.0
        %562 = vmatprep.subr.mxu0 0.0
        %563 = vmatpush1.msra.mxu0 0.0
        %564 = vmatprep.subr.mxu0 0.0
        %565 = vmatpush1.msra.mxu0 0.0
        %566 = vmatprep.subr.mxu0 0.0
        %567 = vmatpush1.msra.mxu0 0.0
        %568 = vmatprep.subr.mxu0 0.0
        %569 = vmatpush1.msra.mxu0 0.0
        %570 = vmatprep.subr.mxu0 0.0
        %571 = vmatpush1.msra.mxu0 0.0
        %572 = vmatprep.subr.mxu0 0.0
        %573 = vmatpush1.msra.mxu0 0.0
        %574 = vmatprep.subr.mxu0 0.0
        %575 = vmatpush1.msra.mxu0 %v387
        %576 = vmatprep.subr.mxu0 0.0
        %577 = vmatpush2.msra.mxu0 0.0
        %578 = vmatprep.subr.mxu0 0.0
        %579 = vmatpush2.msra.mxu0 0.0
        %580 = vmatprep.subr.mxu0 0.0
        %581 = vmatpush2.msra.mxu0 0.0
        %582 = vmatprep.subr.mxu0 0.0
        %583 = vmatpush2.msra.mxu0 0.0
        %584 = vmatprep.subr.mxu0 0.0
        %585 = vmatpush2.msra.mxu0 0.0
        %586 = vmatprep.subr.mxu0 0.0
        %587 = vmatpush2.msra.mxu0 0.0
        %588 = vmatprep.subr.mxu0 0.0
        %589 = vmatpush2.msra.mxu0 0.0
        %590 = vmatprep.subr.mxu0 0.0
        %591 = vmatpush2.msra.mxu0 0.0
        %592 = vmatprep.subr.mxu0 0.0
        %593 = vmatpush2.msra.mxu0 0.0
        %594 = vmatprep.subr.mxu0 0.0
        %595 = vmatpush2.msra.mxu0 0.0
        %596 = vmatprep.subr.mxu0 0.0
        %597 = vmatpush2.msra.mxu0 0.0
        %598 = vmatprep.subr.mxu0 0.0
        %599 = vmatpush2.msra.mxu0 0.0
        %600 = vmatprep.subr.mxu0 0.0
        %601 = vmatpush2.msra.mxu0 0.0
        %602 = vmatprep.subr.mxu0 0.0
        %603 = vmatpush2.msra.mxu0 0.0
        %604 = vmatprep.subr.mxu0 0.0
        %605 = vmatpush2.msra.mxu0 0.0
        %606 = vmatprep.subr.mxu0 0.0
        %607 = vmatpush2.msra.mxu0 0.0
        %608 = vmatprep.mubr.f32.mxu0 0.0
        %609 = vmatmul.mubr.f32.gmra.mxu0 %v539
        %v610 = vpop.f32.mrf.mxu0
        %v611 = vadd.f32 0.0, %v610
        %v612 = vpop.f32.mrf.mxu0
        %613 = vmatprep.mubr.f32.mxu0 0.0
        %614 = vmatmul.mubr.f32.gmra.mxu0 %v542
        %v615 = vpop.f32.mrf.mxu0
        %v616 = vadd.f32 0.0, %v615
        %v617 = vpop.f32.mrf.mxu0
        %618 = vdwg.mxu0
        %619 = vst.msk [vmem:[%s383] sm:$0xff] %vm390, %v611
        %620 = vst.msk [vmem:[%s383 + $0x8] sm:$0x1] %vm388, %v616
        %vm621 = vcmask 57344
        %622 = vst.msk [vmem:[%s386] sm:$0x1] %vm621, %v499
        %623 = vrot.lane.b32.xlu0 %v470, 8
        %v624 = vpop.permute.xlu0 %623
        %vm626 = vcmask 65600
        %627 = vst.msk [vmem:[%s386] sm:$0x1] %vm626, %v624
        %628 = vst.msk [vmem:[%s365] sm:$0x1] %vm621, %v504
        %630 = vrot.lane.b32.xlu0 %v514, 1
        %v631 = vpop.permute.xlu0 %630
        %633 = vst.msk [vmem:[%s365] sm:$0x1] %vm626, %v631
        %p634 = scmp.lt.s32.totalorder %s26, 1
        %s635 = scalar_select %p634, %s26, 1
        %s636 = smul.addr %s635, 2
        %s637 = smul.addr %s636, 8
        %s638 = scalar_lea.vmem %s7, %s637
        %p639 = scmp.lt.s32.totalorder %s26, 1
        %s640 = scalar_select %p639, %s26, 1
        %s641 = scalar_lea.vmem %s8, %s640
        %s642 = sand.u32 %s248, 1
        %s643 = scalar_lea.sflag [#allocation5], %s642
        %s644 = sand.u32 %s248, 1
        %s645 = scalar_lea.vmem [#allocation4], %s644
        // Predicated region
        $region49: #{cif_predictor_forward.1} parent=47 // pred_check
          %p646 = pneg %p206
        $region50: #{cif_predictor_forward.1} parent=47 // pred_check_branch
          %648 = sbr.rel (%p646) target = $region52
        $region51: #{cif_predictor_forward.1} parent=47 // pred_region
          _
        $region52: #{cif_predictor_forward.1} parent=47 // pred_fallthru
          _
        // Predicated region
        $region53: #{cif_predictor_forward.1} parent=47 // pred_check
          %p649 = pneg %p232
        $region54: #{cif_predictor_forward.1} parent=47 // pred_check_branch
          %651 = sbr.rel (%p649) target = $region56
        $region55: #{cif_predictor_forward.1} parent=47 // pred_region
          _
        $region56: #{cif_predictor_forward.1} parent=47 // pred_fallthru
          _
        // Predicated region
        $region57: #{cif_predictor_forward.1} parent=47 // pred_check
          %p652 = pneg %p258
        $region58: #{cif_predictor_forward.1} parent=47 // pred_check_branch
          %654 = sbr.rel (%p652) target = $region60
        $region59: #{cif_predictor_forward.1} parent=47 // pred_region
          %s656 = ssub.s32 16, 16
          %657 = vsyncadd %s643, %s656
          %s658 = smul.addr %s26, 16
          %s659 = scalar_lea.hbm %s9, %s658
          %s661 = sshll.u32 %s645, 4
          %s662 = int_to_ptr.vmem [resolvable:$true] %s661
          %664 = dma.vmem_to_hbm [thread:$0]  %s662, 16, %s659, %s643
        $region60: #{cif_predictor_forward.1} parent=47 // pred_fallthru
          _
      $region48: #{cif_predictor_forward.1} parent=5 // pred_fallthru
        _
      %p665 = scmp.le.s32.totalorder 2, %s21
      // Predicated region
      $region61: #{cif_predictor_forward.1} parent=5 // pred_check
        %p666 = pneg %p665
      $region62: #{cif_predictor_forward.1} parent=5 // pred_check_branch
        %668 = sbr.rel (%p666) target = $region64
      $region63: #{cif_predictor_forward.1} parent=5 // pred_region
        %s669 = ssub.s32 %s21, 2
        // Predicated region
        $region65: #{cif_predictor_forward.1} parent=63 // pred_check
          %p670 = pneg %p212
        $region66: #{cif_predictor_forward.1} parent=63 // pred_check_branch
          %672 = sbr.rel (%p670) target = $region68
        $region67: #{cif_predictor_forward.1} parent=63 // pred_region
          %p673 = scmp.lt.s32.totalorder %s27, 1
          %s674 = scalar_select %p673, %s27, 1
          %s675 = smul.addr %s674, 2
          %s676 = smul.addr %s675, 8
          %s677 = scalar_lea.vmem %s7, %s676
        $region68: #{cif_predictor_forward.1} parent=63 // pred_fallthru
          _
        // Predicated region
        $region69: #{cif_predictor_forward.1} parent=63 // pred_check
          %p678 = pneg %p238
        $region70: #{cif_predictor_forward.1} parent=63 // pred_check_branch
          %680 = sbr.rel (%p678) target = $region72
        $region71: #{cif_predictor_forward.1} parent=63 // pred_region
          %p681 = scmp.lt.s32.totalorder %s27, 1
          %s682 = scalar_select %p681, %s27, 1
          %s683 = scalar_lea.vmem %s8, %s682
        $region72: #{cif_predictor_forward.1} parent=63 // pred_fallthru
          _
        // Predicated region
        $region73: #{cif_predictor_forward.1} parent=63 // pred_check
          %p684 = pneg %p264
        $region74: #{cif_predictor_forward.1} parent=63 // pred_check_branch
          %686 = sbr.rel (%p684) target = $region76
        $region75: #{cif_predictor_forward.1} parent=63 // pred_region
          %s687 = sand.u32 %s249, 1
          %s688 = scalar_lea.sflag [#allocation5], %s687
          %s689 = sand.u32 %s249, 1
          %s690 = scalar_lea.vmem [#allocation4], %s689
          %691 = dma.done %s688, 16
        $region76: #{cif_predictor_forward.1} parent=63 // pred_fallthru
          _
      $region64: #{cif_predictor_forward.1} parent=5 // pred_fallthru
        _
    $region6: #{cif_predictor_forward.1} parent=1 // loop_footer
      %s25 = sadd.s32 1, %s21
    $region7: #{cif_predictor_forward.1} parent=1 // loop_footer_branch
      %20 = sbr.rel target = $region3
    $region8: #{cif_predictor_forward.1} parent=1 // loop_exit
      _
    %692 = vsyncpa [#allocation5], 1
    %s693 = scalar_lea.sflag [#allocation5], 1
    %694 = vsyncpa %s693, 1

</llo_original>
